<compile_context>
chip_gen: v7x
topology: tpu7x:2x2x1
jax: 0.10.0
libtpu: 0.0.40
codegen_flags: <defaults>
</compile_context>

<pallas_src>
import functools

import jax
import jax.numpy as jnp
from jax.experimental import pallas as pl
from jax.experimental.pallas import tpu as pltpu


def _dwconv_kernel(x_main_ref, x_halo_ref, wdw_ref, wpw_ref, bpw_ref, o_ref,
                   xbuf_ref, *, kernel_size, stride, main_rows, halo_rows):
    """One (batch, output-row-tile) grid step.

    x_main_ref : (1, main_h, Wp, Cin)   row block of the padded NHWC input
    x_halo_ref : (1, halo_h, Wp, Cin)   next K-stride rows (halo); dummy if unused
    wdw_ref    : (K*K, Cin)             depthwise taps
    wpw_ref    : (Cin, Cout)            pointwise (1x1) weights
    bpw_ref    : (1, Cout)              f32 bias (depthwise bias already folded in)
    o_ref      : (1, tile_h, Wo, Cout)  output row tile
    xbuf_ref   : VMEM scratch (main_rows + halo_rows, Wp, Cin) staging buffer
                 (dummy (1, Wp, Cin) when halo_rows == 0)
    """
    K = kernel_size
    _, th, Wo, Cout = o_ref.shape
    Cin = x_main_ref.shape[-1]

    if halo_rows > 0:
        # Stage main + halo rows contiguously so every tap is a plain window.
        xbuf_ref[0:main_rows] = x_main_ref[0, 0:main_rows]
        xbuf_ref[main_rows:main_rows + halo_rows] = x_halo_ref[0]

        def tap(kh, kw):
            if stride == 1:
                return xbuf_ref[kh:kh + th, kw:kw + Wo, :]
            # TODO(synk): stride > 1 path uses a strided sublane slice; untested lowering.
            return xbuf_ref[pl.ds(kh, th, stride), pl.ds(kw, Wo, stride), :]
    else:
        def tap(kh, kw):
            if stride == 1:
                return x_main_ref[0, kh:kh + th, kw:kw + Wo, :]
            # TODO(synk): stride > 1 path uses a strided sublane slice; untested lowering.
            return x_main_ref[0, pl.ds(kh, th, stride), pl.ds(kw, Wo, stride), :]

    # Depthwise KxK conv: per-tap window loaded straight from the ref (no full
    # f32 materialization of the input tile), cast per tap, f32 accumulate.
    # TODO(synk): for Cin >= 128, fuse depthwise+pointwise into a single
    # im2col MXU matmul with W_fused[kh,kw,cin,cout] = wdw[kh,kw,cin]*wpw[cin,cout].
    w_taps = wdw_ref[...].astype(jnp.float32)              # (K*K, Cin)
    acc = jnp.zeros((th, Wo, Cin), jnp.float32)
    for kh in range(K):
        for kw in range(K):
            acc = acc + tap(kh, kw).astype(jnp.float32) * w_taps[kh * K + kw]
    # (depthwise bias folded into bpw in the wrapper -> no full-tile add here)

    # Pointwise 1x1 conv == channel matmul on the MXU; keep operands in the
    # parameter dtype (bf16 stays bf16), accumulate in f32.
    lhs = acc.reshape(th * Wo, Cin).astype(wpw_ref.dtype)
    pw = jnp.dot(lhs, wpw_ref[...], preferred_element_type=jnp.float32)
    pw = pw + bpw_ref[...]
    o_ref[...] = pw.reshape(1, th, Wo, Cout).astype(o_ref.dtype)


def _pick_tile_h(Ho, Hp, Wp, Wo, Cin, Cout, stride, K, x_isz, o_isz,
                 budget_bytes=12 * 1024 * 1024):
    """Largest output-row tile whose working set fits `budget_bytes`.

    Constraints: tile_h divides Ho, and (for >1 tile with a halo) the halo row
    count divides tile_h*stride so the halo BlockSpec stays block-aligned.
    The ~12 MiB default keeps double-buffered blocks well inside v7x VMEM.
    """
    halo = max(K - stride, 0)

    def valid(th):
        if Ho % th:
            return False
        if Ho // th == 1 or halo == 0:
            return True
        return (th * stride) % halo == 0

    def footprint(th):
        tb = th * stride
        main_h = Hp if Ho // th == 1 else tb
        in_rows = (th - 1) * stride + K
        hr = max(in_rows - min(in_rows, main_h), 0)
        x_bytes = ((2 * main_h + 2 * max(hr, 1) + (in_rows if hr else 1))
                   * Wp * Cin * x_isz)
        o_bytes = 2 * th * Wo * Cout * o_isz
        f32_tmp = th * Wo * (Cin + Cout) * 4
        return x_bytes + o_bytes + f32_tmp

    cands = [th for th in range(1, Ho + 1) if valid(th)]
    fits = [th for th in cands if footprint(th) <= budget_bytes]
    return max(fits) if fits else min(cands, key=footprint)


def depthwise_conv2d(x_nchw, w_dw, b_dw, w_pw, b_pw, *, kernel_size,
                     padding=0, stride=1, tile_h=None):
    """Pallas equivalent of DepthWiseConv2d.forward (NCHW in / NCHW out)."""
    N, Cin, H, W = x_nchw.shape
    Cout = w_pw.shape[0]
    K = kernel_size
    Ho = (H + 2 * padding - K) // stride + 1
    Wo = (W + 2 * padding - K) // stride + 1

    # NCHW -> NHWC (channels on lanes) + spatial zero pad (wrapper glue).
    # TODO(synk): fold the zero-padding into the kernel (edge masking) to save
    # one HBM round-trip of the activation.
    x = jnp.transpose(x_nchw, (0, 2, 3, 1))
    if padding:
        x = jnp.pad(x, ((0, 0), (padding, padding), (padding, padding), (0, 0)))
    Hp, Wp = x.shape[1], x.shape[2]

    # Weights: depthwise taps (K*K, Cin), pointwise (Cin, Cout); fold the
    # depthwise bias into the pointwise bias (b_eff = b_pw + b_dw @ W_pw).
    wdw = jnp.transpose(w_dw[:, 0, :, :], (1, 2, 0)).reshape(K * K, Cin)
    wpw = jnp.transpose(w_pw[:, :, 0, 0], (1, 0))
    bpw = (b_pw.astype(jnp.float32)
           + b_dw.astype(jnp.float32) @ wpw.astype(jnp.float32)).reshape(1, Cout)

    if tile_h is None:
        tile_h = _pick_tile_h(Ho, Hp, Wp, Wo, Cin, Cout, stride, K,
                              x.dtype.itemsize, x_nchw.dtype.itemsize)
    if Ho % tile_h:
        raise ValueError(f"tile_h={tile_h} must divide Ho={Ho}")
    n_tiles = Ho // tile_h
    tile_base = tile_h * stride                # input rows per output row tile
    in_rows = (tile_h - 1) * stride + K        # input rows a tile actually reads

    if n_tiles == 1:
        main_h = Hp                            # single tile: whole padded height
        main_map = lambda n, t: (n, 0, 0, 0)
    else:
        main_h = tile_base
        main_map = lambda n, t: (n, t, 0, 0)
    main_rows = min(in_rows, main_h)
    halo_rows = in_rows - main_rows            # = K - stride rows from next block
    if halo_rows > 0:
        if tile_base % halo_rows:
            raise ValueError(
                f"halo rows ({halo_rows}) must divide tile_h*stride ({tile_base})")
        hstep = tile_base // halo_rows
        halo_h = halo_rows
        halo_map = lambda n, t: (n, (t + 1) * hstep, 0, 0)
        xbuf_shape = (in_rows, Wp, Cin)
    else:
        halo_h = 1                             # dummy operand, never read
        halo_map = lambda n, t: (n, 0, 0, 0)
        xbuf_shape = (1, Wp, Cin)              # dummy scratch, never touched

    kern = functools.partial(_dwconv_kernel, kernel_size=K, stride=stride,
                             main_rows=main_rows, halo_rows=halo_rows)

    # Explicit VMEM budget: 2x-buffered in/out blocks + scratch + f32 temps.
    est_bytes = ((2 * main_h + 2 * halo_h + xbuf_shape[0]) * Wp * Cin
                 * x.dtype.itemsize
                 + 2 * tile_h * Wo * Cout * x_nchw.dtype.itemsize
                 + tile_h * Wo * (Cin + Cout) * 4
                 + (K * K * Cin + Cin * Cout + Cout) * 4)
    vmem_limit = int(min(max(2 * est_bytes, 32 * 1024 * 1024),
                         100 * 1024 * 1024))

    out_nhwc = pl.pallas_call(
        kern,
        out_shape=jax.ShapeDtypeStruct((N, Ho, Wo, Cout), x_nchw.dtype),
        grid=(N, n_tiles),
        in_specs=[
            pl.BlockSpec((1, main_h, Wp, Cin), main_map),
            pl.BlockSpec((1, halo_h, Wp, Cin), halo_map),
            pl.BlockSpec((K * K, Cin), lambda n, t: (0, 0)),
            pl.BlockSpec((Cin, Cout), lambda n, t: (0, 0)),
            pl.BlockSpec((1, Cout), lambda n, t: (0, 0)),
        ],
        out_specs=pl.BlockSpec((1, tile_h, Wo, Cout), lambda n, t: (n, t, 0, 0)),
        scratch_shapes=[pltpu.VMEM(xbuf_shape, x.dtype)],
        compiler_params=pltpu.CompilerParams(
            dimension_semantics=("parallel", "parallel"),
            vmem_limit_bytes=vmem_limit),
    )(x, x, wdw, wpw, bpw)

    # TODO(synk): for tiny Cout (<128) the output lane dim is only partially
    # used; a (Wo*Cout)-collapsed layout would make stores lane-dense.
    return jnp.transpose(out_nhwc, (0, 3, 1, 2))        # back to NCHW


def _reference(x, w_dw, b_dw, w_pw, b_pw, *, padding, stride):
    """Plain-JAX reference (lax conv) matching nn.Conv2d semantics."""
    y = jax.lax.conv_general_dilated(
        x, w_dw, window_strides=(stride, stride),
        padding=[(padding, padding), (padding, padding)],
        dimension_numbers=("NCHW", "OIHW", "NCHW"),
        feature_group_count=x.shape[1])
    y = y + b_dw.reshape(1, -1, 1, 1)
    z = jax.lax.conv_general_dilated(
        y, w_pw, window_strides=(1, 1), padding="VALID",
        dimension_numbers=("NCHW", "OIHW", "NCHW"))
    return z + b_pw.reshape(1, -1, 1, 1)


if __name__ == "__main__":
    # Small deterministic setup mirroring the module's __init__ shapes.
    N, Cin, Cout, H, W = 2, 4, 8, 16, 16
    K, PAD, STRIDE = 3, 1, 1

    key = jax.random.PRNGKey(0)
    kx, k1, k2, k3, k4 = jax.random.split(key, 5)

    x = jax.random.normal(kx, (N, Cin, H, W), dtype=jnp.float32)
    # nn.Conv2d(dim_in, dim_in, K, groups=dim_in) weight: (Cin, 1, K, K)
    w_dw = jax.random.normal(k1, (Cin, 1, K, K), dtype=jnp.float32) * 0.1
    b_dw = jax.random.normal(k2, (Cin,), dtype=jnp.float32) * 0.1
    # nn.Conv2d(dim_in, dim_out, 1) weight: (Cout, Cin, 1, 1)
    w_pw = jax.random.normal(k3, (Cout, Cin, 1, 1), dtype=jnp.float32) * 0.1
    b_pw = jax.random.normal(k4, (Cout,), dtype=jnp.float32) * 0.1

    ref = _reference(x, w_dw, b_dw, w_pw, b_pw, padding=PAD, stride=STRIDE)

    # Row-tiled path (2 output-row tiles per image -> halo blocks exercised).
    out = depthwise_conv2d(x, w_dw, b_dw, w_pw, b_pw,
                           kernel_size=K, padding=PAD, stride=STRIDE, tile_h=8)
    out = jax.block_until_ready(out)
    assert out.shape == (N, Cout, H, W), out.shape
    assert jnp.allclose(out, ref, atol=1e-4, rtol=1e-4), \
        float(jnp.max(jnp.abs(out - ref)))

    # Auto tile pick (single-tile fallback path on this tiny input).
    out2 = depthwise_conv2d(x, w_dw, b_dw, w_pw, b_pw,
                            kernel_size=K, padding=PAD, stride=STRIDE)
    out2 = jax.block_until_ready(out2)
    assert jnp.allclose(out2, ref, atol=1e-4, rtol=1e-4), \
        float(jnp.max(jnp.abs(out2 - ref)))

    print("KERNEL_OK")
</pallas_src>

<mosaic_0001>
module attributes {stable_mosaic.version = 11 : i64} {
  func.func @_dwconv_kernel(%arg0: i32, %arg1: i32, %arg2: memref<1x8x18x4xf32, #tpu.memory_space<vmem>>, %arg3: memref<1x2x18x4xf32, #tpu.memory_space<vmem>>, %arg4: memref<9x4xf32, #tpu.memory_space<vmem>>, %arg5: memref<4x8xf32, #tpu.memory_space<vmem>>, %arg6: memref<1x8xf32, #tpu.memory_space<vmem>>, %arg7: memref<1x8x16x8xf32, #tpu.memory_space<vmem>>, %arg8: memref<10x18x4xf32, #tpu.memory_space<vmem>>) attributes {dimension_semantics = [#tpu.dimension_semantics<parallel>, #tpu.dimension_semantics<parallel>], iteration_bounds = array<i64: 2, 2>, scalar_prefetch = 0 : i64, scratch_operands = 1 : i64, tpu.core_type = #tpu.core_type<tc>, window_params = [{transform_indices = @transform_0, window_bounds = array<i64: 1, 8, 18, 4>}, {transform_indices = @transform_1, window_bounds = array<i64: 1, 2, 18, 4>}, {pipeline_mode = #tpu.pipeline_mode<synchronous>, transform_indices = @transform_2, window_bounds = array<i64: 9, 4>}, {pipeline_mode = #tpu.pipeline_mode<synchronous>, transform_indices = @transform_3, window_bounds = array<i64: 4, 8>}, {pipeline_mode = #tpu.pipeline_mode<synchronous>, transform_indices = @transform_4, window_bounds = array<i64: 1, 8>}, {transform_indices = @transform_5, window_bounds = array<i64: 1, 8, 16, 8>}]} {
    %c0 = arith.constant 0 : index
    %c0_0 = arith.constant 0 : index
    %c0_1 = arith.constant 0 : index
    %c0_2 = arith.constant 0 : index
    %0 = vector.load %arg2[%c0, %c0_0, %c0_1, %c0_2] : memref<1x8x18x4xf32, #tpu.memory_space<vmem>>, vector<1x8x18x4xf32>
    %1 = vector.shape_cast %0 : vector<1x8x18x4xf32> to vector<8x18x4xf32>
    %c0_3 = arith.constant 0 : index
    %c0_4 = arith.constant 0 : index
    %c0_5 = arith.constant 0 : index
    %2 = vector.load %arg8[%c0_3, %c0_4, %c0_5] : memref<10x18x4xf32, #tpu.memory_space<vmem>>, vector<8x18x4xf32>
    tpu.vector_store %arg8[%c0_3, %c0_4, %c0_5], %1 {strides = array<i32>} : memref<10x18x4xf32, #tpu.memory_space<vmem>>, vector<8x18x4xf32>,
    %c0_6 = arith.constant 0 : index
    %c0_7 = arith.constant 0 : index
    %c0_8 = arith.constant 0 : index
    %c0_9 = arith.constant 0 : index
    %3 = vector.load %arg3[%c0_6, %c0_7, %c0_8, %c0_9] : memref<1x2x18x4xf32, #tpu.memory_space<vmem>>, vector<1x2x18x4xf32>
    %4 = vector.shape_cast %3 : vector<1x2x18x4xf32> to vector<2x18x4xf32>
    %c8 = arith.constant 8 : index
    %c0_10 = arith.constant 0 : index
    %c0_11 = arith.constant 0 : index
    %5 = vector.load %arg8[%c8, %c0_10, %c0_11] : memref<10x18x4xf32, #tpu.memory_space<vmem>>, vector<2x18x4xf32>
    tpu.vector_store %arg8[%c8, %c0_10, %c0_11], %4 {strides = array<i32>} : memref<10x18x4xf32, #tpu.memory_space<vmem>>, vector<2x18x4xf32>,
    %c0_12 = arith.constant 0 : index
    %c0_13 = arith.constant 0 : index
    %6 = vector.load %arg4[%c0_12, %c0_13] : memref<9x4xf32, #tpu.memory_space<vmem>>, vector<9x4xf32>
    %cst = arith.constant 0.000000e+00 : f32
    %7 = vector.broadcast %cst : f32 to vector<8x16x4xf32>
    %c0_14 = arith.constant 0 : index
    %c0_15 = arith.constant 0 : index
    %c0_16 = arith.constant 0 : index
    %8 = vector.load %arg8[%c0_14, %c0_15, %c0_16] : memref<10x18x4xf32, #tpu.memory_space<vmem>>, vector<8x16x4xf32>
    %9 = vector.extract_strided_slice %6 {offsets = [0, 0], sizes = [1, 4], strides = [1, 1]} : vector<9x4xf32> to vector<1x4xf32>
    %10 = vector.shape_cast %9 : vector<1x4xf32> to vector<4xf32>
    %11 = vector.shape_cast %10 : vector<4xf32> to vector<1x1x4xf32>
    %12 = vector.broadcast %11 : vector<1x1x4xf32> to vector<8x16x4xf32>
    %13 = arith.mulf %8, %12 : vector<8x16x4xf32>
    %14 = arith.addf %7, %13 : vector<8x16x4xf32>
    %c0_17 = arith.constant 0 : index
    %c1 = arith.constant 1 : index
    %c0_18 = arith.constant 0 : index
    %15 = vector.load %arg8[%c0_17, %c1, %c0_18] : memref<10x18x4xf32, #tpu.memory_space<vmem>>, vector<8x16x4xf32>
    %16 = vector.extract_strided_slice %6 {offsets = [1, 0], sizes = [1, 4], strides = [1, 1]} : vector<9x4xf32> to vector<1x4xf32>
    %17 = vector.shape_cast %16 : vector<1x4xf32> to vector<4xf32>
    %18 = vector.shape_cast %17 : vector<4xf32> to vector<1x1x4xf32>
    %19 = vector.broadcast %18 : vector<1x1x4xf32> to vector<8x16x4xf32>
    %20 = arith.mulf %15, %19 : vector<8x16x4xf32>
    %21 = arith.addf %14, %20 : vector<8x16x4xf32>
    %c0_19 = arith.constant 0 : index
    %c2 = arith.constant 2 : index
    %c0_20 = arith.constant 0 : index
    %22 = vector.load %arg8[%c0_19, %c2, %c0_20] : memref<10x18x4xf32, #tpu.memory_space<vmem>>, vector<8x16x4xf32>
    %23 = vector.extract_strided_slice %6 {offsets = [2, 0], sizes = [1, 4], strides = [1, 1]} : vector<9x4xf32> to vector<1x4xf32>
    %24 = vector.shape_cast %23 : vector<1x4xf32> to vector<4xf32>
    %25 = vector.shape_cast %24 : vector<4xf32> to vector<1x1x4xf32>
    %26 = vector.broadcast %25 : vector<1x1x4xf32> to vector<8x16x4xf32>
    %27 = arith.mulf %22, %26 : vector<8x16x4xf32>
    %28 = arith.addf %21, %27 : vector<8x16x4xf32>
    %c1_21 = arith.constant 1 : index
    %c0_22 = arith.constant 0 : index
    %c0_23 = arith.constant 0 : index
    %29 = vector.load %arg8[%c1_21, %c0_22, %c0_23] : memref<10x18x4xf32, #tpu.memory_space<vmem>>, vector<8x16x4xf32>
    %30 = vector.extract_strided_slice %6 {offsets = [3, 0], sizes = [1, 4], strides = [1, 1]} : vector<9x4xf32> to vector<1x4xf32>
    %31 = vector.shape_cast %30 : vector<1x4xf32> to vector<4xf32>
    %32 = vector.shape_cast %31 : vector<4xf32> to vector<1x1x4xf32>
    %33 = vector.broadcast %32 : vector<1x1x4xf32> to vector<8x16x4xf32>
    %34 = arith.mulf %29, %33 : vector<8x16x4xf32>
    %35 = arith.addf %28, %34 : vector<8x16x4xf32>
    %c1_24 = arith.constant 1 : index
    %c1_25 = arith.constant 1 : index
    %c0_26 = arith.constant 0 : index
    %36 = vector.load %arg8[%c1_24, %c1_25, %c0_26] : memref<10x18x4xf32, #tpu.memory_space<vmem>>, vector<8x16x4xf32>
    %37 = vector.extract_strided_slice %6 {offsets = [4, 0], sizes = [1, 4], strides = [1, 1]} : vector<9x4xf32> to vector<1x4xf32>
    %38 = vector.shape_cast %37 : vector<1x4xf32> to vector<4xf32>
    %39 = vector.shape_cast %38 : vector<4xf32> to vector<1x1x4xf32>
    %40 = vector.broadcast %39 : vector<1x1x4xf32> to vector<8x16x4xf32>
    %41 = arith.mulf %36, %40 : vector<8x16x4xf32>
    %42 = arith.addf %35, %41 : vector<8x16x4xf32>
    %c1_27 = arith.constant 1 : index
    %c2_28 = arith.constant 2 : index
    %c0_29 = arith.constant 0 : index
    %43 = vector.load %arg8[%c1_27, %c2_28, %c0_29] : memref<10x18x4xf32, #tpu.memory_space<vmem>>, vector<8x16x4xf32>
    %44 = vector.extract_strided_slice %6 {offsets = [5, 0], sizes = [1, 4], strides = [1, 1]} : vector<9x4xf32> to vector<1x4xf32>
    %45 = vector.shape_cast %44 : vector<1x4xf32> to vector<4xf32>
    %46 = vector.shape_cast %45 : vector<4xf32> to vector<1x1x4xf32>
    %47 = vector.broadcast %46 : vector<1x1x4xf32> to vector<8x16x4xf32>
    %48 = arith.mulf %43, %47 : vector<8x16x4xf32>
    %49 = arith.addf %42, %48 : vector<8x16x4xf32>
    %c2_30 = arith.constant 2 : index
    %c0_31 = arith.constant 0 : index
    %c0_32 = arith.constant 0 : index
    %50 = vector.load %arg8[%c2_30, %c0_31, %c0_32] : memref<10x18x4xf32, #tpu.memory_space<vmem>>, vector<8x16x4xf32>
    %51 = vector.extract_strided_slice %6 {offsets = [6, 0], sizes = [1, 4], strides = [1, 1]} : vector<9x4xf32> to vector<1x4xf32>
    %52 = vector.shape_cast %51 : vector<1x4xf32> to vector<4xf32>
    %53 = vector.shape_cast %52 : vector<4xf32> to vector<1x1x4xf32>
    %54 = vector.broadcast %53 : vector<1x1x4xf32> to vector<8x16x4xf32>
    %55 = arith.mulf %50, %54 : vector<8x16x4xf32>
    %56 = arith.addf %49, %55 : vector<8x16x4xf32>
    %c2_33 = arith.constant 2 : index
    %c1_34 = arith.constant 1 : index
    %c0_35 = arith.constant 0 : index
    %57 = vector.load %arg8[%c2_33, %c1_34, %c0_35] : memref<10x18x4xf32, #tpu.memory_space<vmem>>, vector<8x16x4xf32>
    %58 = vector.extract_strided_slice %6 {offsets = [7, 0], sizes = [1, 4], strides = [1, 1]} : vector<9x4xf32> to vector<1x4xf32>
    %59 = vector.shape_cast %58 : vector<1x4xf32> to vector<4xf32>
    %60 = vector.shape_cast %59 : vector<4xf32> to vector<1x1x4xf32>
    %61 = vector.broadcast %60 : vector<1x1x4xf32> to vector<8x16x4xf32>
    %62 = arith.mulf %57, %61 : vector<8x16x4xf32>
    %63 = arith.addf %56, %62 : vector<8x16x4xf32>
    %c2_36 = arith.constant 2 : index
    %c2_37 = arith.constant 2 : index
    %c0_38 = arith.constant 0 : index
    %64 = vector.load %arg8[%c2_36, %c2_37, %c0_38] : memref<10x18x4xf32, #tpu.memory_space<vmem>>, vector<8x16x4xf32>
    %65 = vector.extract_strided_slice %6 {offsets = [8, 0], sizes = [1, 4], strides = [1, 1]} : vector<9x4xf32> to vector<1x4xf32>
    %66 = vector.shape_cast %65 : vector<1x4xf32> to vector<4xf32>
    %67 = vector.shape_cast %66 : vector<4xf32> to vector<1x1x4xf32>
    %68 = vector.broadcast %67 : vector<1x1x4xf32> to vector<8x16x4xf32>
    %69 = arith.mulf %64, %68 : vector<8x16x4xf32>
    %70 = arith.addf %63, %69 : vector<8x16x4xf32>
    %71 = vector.shape_cast %70 : vector<8x16x4xf32> to vector<128x4xf32>
    %c0_39 = arith.constant 0 : index
    %c0_40 = arith.constant 0 : index
    %72 = vector.load %arg5[%c0_39, %c0_40] : memref<4x8xf32, #tpu.memory_space<vmem>>, vector<4x8xf32>
    %cst_41 = arith.constant dense<0.000000e+00> : vector<128x8xf32>
    %73 = tpu.matmul %71, %72, %cst_41 {dimension_numbers = #tpu.dot_dimension_numbers<[1], [0], [0], [1], [0, 0, 1, 1], [], []>} : vector<128x4xf32>, vector<4x8xf32>, vector<128x8xf32> -> vector<128x8xf32>
    %c0_42 = arith.constant 0 : index
    %c0_43 = arith.constant 0 : index
    %74 = vector.load %arg6[%c0_42, %c0_43] : memref<1x8xf32, #tpu.memory_space<vmem>>, vector<1x8xf32>
    %75 = vector.broadcast %74 : vector<1x8xf32> to vector<128x8xf32>
    %76 = arith.addf %73, %75 : vector<128x8xf32>
    %77 = vector.shape_cast %76 : vector<128x8xf32> to vector<1x8x16x8xf32>
    %c0_44 = arith.constant 0 : index
    %c0_45 = arith.constant 0 : index
    %c0_46 = arith.constant 0 : index
    %c0_47 = arith.constant 0 : index
    %78 = vector.load %arg7[%c0_44, %c0_45, %c0_46, %c0_47] : memref<1x8x16x8xf32, #tpu.memory_space<vmem>>, vector<1x8x16x8xf32>
    tpu.vector_store %arg7[%c0_44, %c0_45, %c0_46, %c0_47], %77 {strides = array<i32>} : memref<1x8x16x8xf32, #tpu.memory_space<vmem>>, vector<1x8x16x8xf32>,
    return
  }
  func.func @transform_0(%arg0: i32, %arg1: i32) -> (i32, i32, i32, i32) {
    %c0_i32 = arith.constant 0 : i32
    %c0_i32_0 = arith.constant 0 : i32
    %c0_i32_1 = arith.constant 0 : i32
    return %arg0, %arg1, %c0_i32, %c0_i32_0 : i32, i32, i32, i32
  }
  func.func @transform_1(%arg0: i32, %arg1: i32) -> (i32, i32, i32, i32) {
    %c1_i32 = arith.constant 1 : i32
    %0 = arith.addi %arg1, %c1_i32 : i32
    %c4_i32 = arith.constant 4 : i32
    %1 = arith.muli %0, %c4_i32 : i32
    %c0_i32 = arith.constant 0 : i32
    %c0_i32_0 = arith.constant 0 : i32
    %c0_i32_1 = arith.constant 0 : i32
    return %arg0, %1, %c0_i32, %c0_i32_0 : i32, i32, i32, i32
  }
  func.func @transform_2(%arg0: i32, %arg1: i32) -> (i32, i32) {
    %c0_i32 = arith.constant 0 : i32
    %c0_i32_0 = arith.constant 0 : i32
    %c0_i32_1 = arith.constant 0 : i32
    return %c0_i32, %c0_i32_0 : i32, i32
  }
  func.func @transform_3(%arg0: i32, %arg1: i32) -> (i32, i32) {
    %c0_i32 = arith.constant 0 : i32
    %c0_i32_0 = arith.constant 0 : i32
    %c0_i32_1 = arith.constant 0 : i32
    return %c0_i32, %c0_i32_0 : i32, i32
  }
  func.func @transform_4(%arg0: i32, %arg1: i32) -> (i32, i32) {
    %c0_i32 = arith.constant 0 : i32
    %c0_i32_0 = arith.constant 0 : i32
    %c0_i32_1 = arith.constant 0 : i32
    return %c0_i32, %c0_i32_0 : i32, i32
  }
  func.func @transform_5(%arg0: i32, %arg1: i32) -> (i32, i32, i32, i32) {
    %c0_i32 = arith.constant 0 : i32
    %c0_i32_0 = arith.constant 0 : i32
    %c0_i32_1 = arith.constant 0 : i32
    return %arg0, %arg1, %c0_i32, %c0_i32_0 : i32, i32, i32, i32
  }
}

</mosaic_0001>

<llo_original>
// kernel: tpu_custom_call.1
$region0: #{tpu_custom_call.1}
  #allocation0 [shape = 'u32[]', space=smem, size = 0x4, offset = 0x4, fixed_abs, tag = 'smem constant byte address 0x4 - core index']
  #allocation1 [shape = 'u32[144,128]{1,0:T(1,128)}', space=vmem, size = 0x12000, scoped, tag = 'internal scratch']
  #allocation2 [shape = 'f32[10,18,4]{2,1,0:T(8,128)}', space=vmem, size = 0x1e000, scoped, tag = 'scratch operand']
  %s0 = inlined_call_operand.vmem [shape: f32[2,18,18,4], index: 0, kind: input, shape index: {}]
  %s1 = inlined_call_operand.vmem [shape: f32[2,18,18,4], index: 1, kind: input, shape index: {}]
  %s2 = inlined_call_operand.vmem [shape: f32[9,4], index: 2, kind: input, shape index: {}]
  %s3 = inlined_call_operand.vmem [shape: f32[4,8], index: 3, kind: input, shape index: {}]
  %s4 = inlined_call_operand.vmem [shape: f32[1,8], index: 4, kind: input, shape index: {}]
  %s5 = inlined_call_operand.vmem [shape: f32[2,16,16,8], index: 5, kind: output, shape index: {}]
  %s6 = sld [smem:[#allocation0]]
  $region53: #{tpu_custom_call.1} parent=0
    _
  %s8 = ssub.s32 1, %s6
  %s9 = scalar_select 0, %s8, %s6
  loop: start=0, step=1, limit=6
  $region2: #{tpu_custom_call.1} parent=0 // loop_pre_header
    _
  $region3: #{tpu_custom_call.1} parent=0 // loop_header
    %s11 = sphi 0, %s15
    %p12 = scmp.ge.s32.totalorder %s11, 6
    %s18 = sphi 0, %s30
    %s19 = sphi 0, %s26
    %s20 = sphi 0, %s18
    %s21 = sphi 0, %s19
    %s22 = sphi 0, %s20
    %s23 = sphi 0, %s21
    %s35 = sphi 0, %s37
    %s38 = sphi 0, %s35
    %s39 = sphi 0, %s38
    %s55 = sphi 0, %s39
    %s67 = sphi 0, %s69
    %s70 = sphi 0, %s67
    %s71 = sphi 0, %s70
    %s87 = sphi 0, %s71
    %s91 = sphi 0, %s91
    %s93 = sphi 0, %s91
    %s94 = sphi 0, %s93
    %s108 = sphi 0, %s94
    %s112 = sphi 0, %s112
    %s114 = sphi 0, %s112
    %s115 = sphi 0, %s114
    %s129 = sphi 0, %s115
    %s133 = sphi 0, %s133
    %s135 = sphi 0, %s133
    %s136 = sphi 0, %s135
    %s150 = sphi 0, %s136
    %s158 = sphi 0, %s160
    %s161 = sphi 0, %s158
    %s162 = sphi 0, %s161
    %s178 = sphi 0, %s162
  $region4: #{tpu_custom_call.1} parent=0 // loop_header_branch
    %14 = sbr.rel (%p12) target = $region8
  $region5: #{tpu_custom_call.1} parent=0 // loop_body
    %s16 = ssub.s32 %s11, 1
    %s17 = ssub.s32 %s11, 2
    %s24 = sadd.s32 1, %s19
    %p25 = scmp.ge.s32.totalorder %s24, 2
    %s26 = scalar_select %p25, 0, %s24
    %s27 = sadd.s32 1, %s18
    %s28 = scalar_select %p25, %s27, %s18
    %p29 = scmp.ge.s32.totalorder %s28, 2
    %s30 = scalar_select %p29, 0, %s28
    %s31 = ssub.s32 %s18, %s30
    %s32 = ssub.s32 %s19, %s26
    %s33 = sor.u32 %s31, %s32
    %p34 = scmp.eq.s32.totalorder %s33, 0
    %s36 = sadd.s32 %s35, 1
    %s37 = scalar_select %p34, %s35, %s36
    %p40 = pneg %p34
    %p41 = scmp.eq.s32.totalorder %s11, 3
    %p42 = por %p40, %p41
    %p43 = scmp.ne.s32.totalorder %s35, %s38
    %p44 = scmp.eq.s32.totalorder %s11, 0
    %p45 = por %p43, %p44
    %p46 = scmp.ne.s32.totalorder %s35, %s38
    %p47 = scmp.eq.s32.totalorder %s16, 3
    %p48 = por %p46, %p47
    %p49 = scmp.ne.s32.totalorder %s38, %s39
    %p50 = scmp.eq.s32.totalorder %s16, 0
    %p51 = por %p49, %p50
    %p52 = scmp.ne.s32.totalorder %s38, %s39
    %p53 = scmp.eq.s32.totalorder %s17, 3
    %p54 = por %p52, %p53
    %p56 = scmp.ne.s32.totalorder %s39, %s55
    %p57 = scmp.eq.s32.totalorder %s17, 0
    %p58 = por %p56, %p57
    %s59 = sadd.s32 %s19, 1
    %s60 = smul.u32 %s59, 4
    %s61 = sadd.s32 %s26, 1
    %s62 = smul.u32 %s61, 4
    %s63 = ssub.s32 %s18, %s30
    %s64 = ssub.s32 %s60, %s62
    %s65 = sor.u32 %s63, %s64
    %p66 = scmp.eq.s32.totalorder %s65, 0
    %s68 = sadd.s32 %s67, 1
    %s69 = scalar_select %p66, %s67, %s68
    %p72 = pneg %p66
    %p73 = scmp.eq.s32.totalorder %s11, 3
    %p74 = por %p72, %p73
    %p75 = scmp.ne.s32.totalorder %s67, %s70
    %p76 = scmp.eq.s32.totalorder %s11, 0
    %p77 = por %p75, %p76
    %p78 = scmp.ne.s32.totalorder %s67, %s70
    %p79 = scmp.eq.s32.totalorder %s16, 3
    %p80 = por %p78, %p79
    %p81 = scmp.ne.s32.totalorder %s70, %s71
    %p82 = scmp.eq.s32.totalorder %s16, 0
    %p83 = por %p81, %p82
    %p84 = scmp.ne.s32.totalorder %s70, %s71
    %p85 = scmp.eq.s32.totalorder %s17, 3
    %p86 = por %p84, %p85
    %p88 = scmp.ne.s32.totalorder %s71, %s87
    %p89 = scmp.eq.s32.totalorder %s17, 0
    %p90 = por %p88, %p89
    %s92 = sadd.s32 %s91, 1
    %p95 = scmp.eq.s32.totalorder %s11, 3
    %p96 = scmp.ne.s32.totalorder %s91, %s93
    %p97 = scmp.eq.s32.totalorder %s11, 0
    %p98 = por %p96, %p97
    %p99 = scmp.ne.s32.totalorder %s91, %s93
    %p100 = scmp.eq.s32.totalorder %s16, 3
    %p101 = por %p99, %p100
    %p102 = scmp.ne.s32.totalorder %s93, %s94
    %p103 = scmp.eq.s32.totalorder %s16, 0
    %p104 = por %p102, %p103
    %p105 = scmp.ne.s32.totalorder %s93, %s94
    %p106 = scmp.eq.s32.totalorder %s17, 3
    %p107 = por %p105, %p106
    %p109 = scmp.ne.s32.totalorder %s94, %s108
    %p110 = scmp.eq.s32.totalorder %s17, 0
    %p111 = por %p109, %p110
    %s113 = sadd.s32 %s112, 1
    %p116 = scmp.eq.s32.totalorder %s11, 3
    %p117 = scmp.ne.s32.totalorder %s112, %s114
    %p118 = scmp.eq.s32.totalorder %s11, 0
    %p119 = por %p117, %p118
    %p120 = scmp.ne.s32.totalorder %s112, %s114
    %p121 = scmp.eq.s32.totalorder %s16, 3
    %p122 = por %p120, %p121
    %p123 = scmp.ne.s32.totalorder %s114, %s115
    %p124 = scmp.eq.s32.totalorder %s16, 0
    %p125 = por %p123, %p124
    %p126 = scmp.ne.s32.totalorder %s114, %s115
    %p127 = scmp.eq.s32.totalorder %s17, 3
    %p128 = por %p126, %p127
    %p130 = scmp.ne.s32.totalorder %s115, %s129
    %p131 = scmp.eq.s32.totalorder %s17, 0
    %p132 = por %p130, %p131
    %s134 = sadd.s32 %s133, 1
    %p137 = scmp.eq.s32.totalorder %s11, 3
    %p138 = scmp.ne.s32.totalorder %s133, %s135
    %p139 = scmp.eq.s32.totalorder %s11, 0
    %p140 = por %p138, %p139
    %p141 = scmp.ne.s32.totalorder %s133, %s135
    %p142 = scmp.eq.s32.totalorder %s16, 3
    %p143 = por %p141, %p142
    %p144 = scmp.ne.s32.totalorder %s135, %s136
    %p145 = scmp.eq.s32.totalorder %s16, 0
    %p146 = por %p144, %p145
    %p147 = scmp.ne.s32.totalorder %s135, %s136
    %p148 = scmp.eq.s32.totalorder %s17, 3
    %p149 = por %p147, %p148
    %p151 = scmp.ne.s32.totalorder %s136, %s150
    %p152 = scmp.eq.s32.totalorder %s17, 0
    %p153 = por %p151, %p152
    %s154 = ssub.s32 %s18, %s30
    %s155 = ssub.s32 %s19, %s26
    %s156 = sor.u32 %s154, %s155
    %p157 = scmp.eq.s32.totalorder %s156, 0
    %s159 = sadd.s32 %s158, 1
    %s160 = scalar_select %p157, %s158, %s159
    %p163 = pneg %p157
    %p164 = scmp.eq.s32.totalorder %s11, 3
    %p165 = por %p163, %p164
    %p166 = scmp.ne.s32.totalorder %s158, %s161
    %p167 = scmp.eq.s32.totalorder %s11, 0
    %p168 = por %p166, %p167
    %p169 = scmp.ne.s32.totalorder %s158, %s161
    %p170 = scmp.eq.s32.totalorder %s16, 3
    %p171 = por %p169, %p170
    %p172 = scmp.ne.s32.totalorder %s161, %s162
    %p173 = scmp.eq.s32.totalorder %s16, 0
    %p174 = por %p172, %p173
    %p175 = scmp.ne.s32.totalorder %s161, %s162
    %p176 = scmp.eq.s32.totalorder %s17, 3
    %p177 = por %p175, %p176
    %p179 = scmp.ne.s32.totalorder %s162, %s178
    %p180 = scmp.eq.s32.totalorder %s17, 0
    %p181 = por %p179, %p180
    %p182 = scmp.le.s32.totalorder 1, %s11
    %p183 = scmp.lt.s32.totalorder %s11, 5
    %p184 = pnand %p182, %p183
    %p185 = pneg %p184
    // Predicated region
    $region9: #{tpu_custom_call.1} parent=5 // pred_check
      _
    $region10: #{tpu_custom_call.1} parent=5 // pred_check_branch
      %187 = sbr.rel (%p184) target = $region12
    $region11: #{tpu_custom_call.1} parent=5 // pred_region
      %s188 = ssub.s32 %s11, 1
      // Predicated region
      $region13: #{tpu_custom_call.1} parent=11 // pred_check
        %p189 = pneg %p104
      $region14: #{tpu_custom_call.1} parent=11 // pred_check_branch
        %191 = sbr.rel (%p189) target = $region16
      $region15: #{tpu_custom_call.1} parent=11 // pred_region
        _
      $region16: #{tpu_custom_call.1} parent=11 // pred_fallthru
        _
      // Predicated region
      $region17: #{tpu_custom_call.1} parent=11 // pred_check
        %p192 = pneg %p125
      $region18: #{tpu_custom_call.1} parent=11 // pred_check_branch
        %194 = sbr.rel (%p192) target = $region20
      $region19: #{tpu_custom_call.1} parent=11 // pred_region
        _
      $region20: #{tpu_custom_call.1} parent=11 // pred_fallthru
        _
      // Predicated region
      $region21: #{tpu_custom_call.1} parent=11 // pred_check
        %p195 = pneg %p146
      $region22: #{tpu_custom_call.1} parent=11 // pred_check_branch
        %197 = sbr.rel (%p195) target = $region24
      $region23: #{tpu_custom_call.1} parent=11 // pred_region
        _
      $region24: #{tpu_custom_call.1} parent=11 // pred_fallthru
        _
    $region12: #{tpu_custom_call.1} parent=5 // pred_fallthru
      _
    %p198 = scmp.lt.s32.totalorder %s11, 4
    // Predicated region
    $region25: #{tpu_custom_call.1} parent=5 // pred_check
      %p199 = pneg %p198
    $region26: #{tpu_custom_call.1} parent=5 // pred_check_branch
      %201 = sbr.rel (%p199) target = $region28
    $region27: #{tpu_custom_call.1} parent=5 // pred_region
      // Predicated region
      $region29: #{tpu_custom_call.1} parent=27 // pred_check
        %p202 = pneg %p45
      $region30: #{tpu_custom_call.1} parent=27 // pred_check_branch
        %204 = sbr.rel (%p202) target = $region32
      $region31: #{tpu_custom_call.1} parent=27 // pred_region
        %s205 = smul.u32 8, %s19
        %s206 = ssub.s32 18, %s205
        %p207 = scmp.lt.s32.totalorder %s206, 8
        %s208 = scalar_select %p207, %s206, 8
        %s209 = smul.u32 128, %s208
        %s210 = smul.u32 %s209, 3
        %p211 = scmp.lt.s32.totalorder %s18, 1
        %s212 = scalar_select %p211, %s18, 1
        %p213 = scmp.lt.s32.totalorder %s205, 17
        %s214 = scalar_select %p213, %s205, 17
        %s215 = smul.addr %s214, 3
        %s216 = smul.addr %s212, 54
        %s217 = sadd.s32 %s215, %s216
        %s218 = smul.addr %s217, 8
        %s219 = scalar_lea.vmem %s0, %s218
        %s220 = smul.u32 8, %s19
        %s221 = ssub.s32 18, %s220
        %p222 = scmp.lt.s32.totalorder %s221, 8
        %s223 = scalar_select %p222, %s221, 8
        %s224 = smul.u32 128, %s223
        %s225 = smul.u32 %s224, 3
      $region32: #{tpu_custom_call.1} parent=27 // pred_fallthru
        _
      // Predicated region
      $region33: #{tpu_custom_call.1} parent=27 // pred_check
        %p226 = pneg %p77
      $region34: #{tpu_custom_call.1} parent=27 // pred_check_branch
        %228 = sbr.rel (%p226) target = $region36
      $region35: #{tpu_custom_call.1} parent=27 // pred_region
        %s229 = sadd.s32 %s19, 1
        %s230 = smul.u32 %s229, 4
        %s231 = smul.u32 2, %s230
        %p232 = scmp.lt.s32.totalorder %s18, 1
        %s233 = scalar_select %p232, %s18, 1
        %p234 = scmp.lt.s32.totalorder %s231, 17
        %s235 = scalar_select %p234, %s231, 17
        %s236 = smul.addr %s235, 3
        %s237 = smul.addr %s233, 54
        %s238 = sadd.s32 %s236, %s237
        %s239 = smul.addr %s238, 8
        %s240 = scalar_lea.vmem %s1, %s239
        %s241 = sadd.s32 %s19, 1
        %s242 = smul.u32 %s241, 4
        %s243 = smul.u32 2, %s242
      $region36: #{tpu_custom_call.1} parent=27 // pred_fallthru
        _
    $region28: #{tpu_custom_call.1} parent=5 // pred_fallthru
      _
    %p244 = scmp.le.s32.totalorder 1, %s11
    %p245 = scmp.lt.s32.totalorder %s11, 5
    %p246 = pnand %p244, %p245
    %p247 = pneg %p246
    // Predicated region
    $region37: #{tpu_custom_call.1} parent=5 // pred_check
      _
    $region38: #{tpu_custom_call.1} parent=5 // pred_check_branch
      %249 = sbr.rel (%p246) target = $region40
    $region39: #{tpu_custom_call.1} parent=5 // pred_region
      %s250 = ssub.s32 %s11, 1
      %s251 = smul.u32 8, %s21
      %s252 = ssub.s32 18, %s251
      %p253 = scmp.lt.s32.totalorder %s252, 8
      %s254 = scalar_select %p253, %s252, 8
      %s255 = smul.u32 128, %s254
      %s256 = smul.u32 %s255, 3
      %p257 = scmp.lt.s32.totalorder %s20, 1
      %s258 = scalar_select %p257, %s20, 1
      %p259 = scmp.lt.s32.totalorder %s251, 17
      %s260 = scalar_select %p259, %s251, 17
      %s261 = smul.addr %s260, 3
      %s262 = smul.addr %s258, 54
      %s263 = sadd.s32 %s261, %s262
      %s264 = smul.addr %s263, 8
      %s265 = scalar_lea.vmem %s0, %s264
      %p266 = pneg %p51
      %p267 = pneg %p48
      %s268 = sadd.s32 %s21, 1
      %s269 = smul.u32 %s268, 4
      %s270 = smul.u32 2, %s269
      %p271 = scmp.lt.s32.totalorder %s20, 1
      %s272 = scalar_select %p271, %s20, 1
      %p273 = scmp.lt.s32.totalorder %s270, 17
      %s274 = scalar_select %p273, %s270, 17
      %s275 = smul.addr %s274, 3
      %s276 = smul.addr %s272, 54
      %s277 = sadd.s32 %s275, %s276
      %s278 = smul.addr %s277, 8
      %s279 = scalar_lea.vmem %s1, %s278
      %p280 = pneg %p83
      %p281 = pneg %p80
      %p282 = pneg %p104
      %p283 = pneg %p101
      %p284 = pneg %p125
      %p285 = pneg %p122
      %p286 = pneg %p146
      %p287 = pneg %p143
      %p288 = pneg %p174
      %p289 = pneg %p171
      %s290 = smul.u32 8, %s21
      %p291 = scmp.lt.s32.totalorder %s20, 1
      %s292 = scalar_select %p291, %s20, 1
      %p293 = scmp.lt.s32.totalorder %s290, 15
      %s294 = scalar_select %p293, %s290, 15
      %s295 = smul.addr %s294, 2
      %s296 = smul.addr %s292, 32
      %s297 = sadd.s32 %s295, %s296
      %s298 = smul.addr %s297, 8
      %s299 = scalar_lea.vmem %s5, %s298
      %s300 = smul.u32 8, %s21
      %s301 = ssub.s32 18, %s300
      %p302 = scmp.lt.s32.totalorder %s301, 8
      %s303 = scalar_select %p302, %s301, 8
      %s304 = smul.u32 128, %s303
      %s305 = smul.u32 %s304, 3
      %p306 = scmp.lt.s32.totalorder %s20, 1
      %s307 = scalar_select %p306, %s20, 1
      %p308 = scmp.lt.s32.totalorder %s300, 17
      %s309 = scalar_select %p308, %s300, 17
      %s310 = smul.addr %s309, 3
      %s311 = smul.addr %s307, 54
      %s312 = sadd.s32 %s310, %s311
      %s313 = smul.addr %s312, 8
      %s314 = scalar_lea.vmem %s0, %s313
      %s315 = smul.u32 8, %s21
      %s316 = ssub.s32 18, %s315
      %p317 = scmp.lt.s32.totalorder %s316, 8
      %s318 = scalar_select %p317, %s316, 8
      %s319 = smul.u32 128, %s318
      %s320 = smul.u32 %s319, 3
      %s321 = sadd.s32 %s21, 1
      %s322 = smul.u32 %s321, 4
      %s323 = smul.u32 2, %s322
      %p324 = scmp.lt.s32.totalorder %s20, 1
      %s325 = scalar_select %p324, %s20, 1
      %p326 = scmp.lt.s32.totalorder %s323, 17
      %s327 = scalar_select %p326, %s323, 17
      %s328 = smul.addr %s327, 3
      %s329 = smul.addr %s325, 54
      %s330 = sadd.s32 %s328, %s329
      %s331 = smul.addr %s330, 8
      %s332 = scalar_lea.vmem %s1, %s331
      %s333 = sadd.s32 %s21, 1
      %s334 = smul.u32 %s333, 4
      %s335 = smul.u32 2, %s334
      %s336 = smul.u32 8, %s21
      %p337 = scmp.lt.s32.totalorder %s20, 1
      %s338 = scalar_select %p337, %s20, 1
      %p339 = scmp.lt.s32.totalorder %s336, 15
      %s340 = scalar_select %p339, %s336, 15
      %s341 = smul.addr %s340, 2
      %s342 = smul.addr %s338, 32
      %s343 = sadd.s32 %s341, %s342
      %s344 = smul.addr %s343, 8
      %s345 = scalar_lea.vmem %s5, %s344
      %s346 = smul.u32 8, %s21
      %v347 = vld [vmem:[%s314] sm:$0xff]
      %v348 = vld [vmem:[%s314 + $0x8] sm:$0xff]
      %v349 = vld [vmem:[%s314 + $0x10] sm:$0x3]
      %v350 = vld [vmem:[%s314 + $0x18] sm:$0xff]
      %v351 = vld [vmem:[%s314 + $0x20] sm:$0xff]
      %v352 = vld [vmem:[%s314 + $0x28] sm:$0x3]
      %v353 = vld [vmem:[%s314 + $0x30] sm:$0xff]
      %v354 = vld [vmem:[%s314 + $0x38] sm:$0xff]
      %v355 = vld [vmem:[%s314 + $0x40] sm:$0x3]
      %v356 = vld [vmem:[%s314 + $0x48] sm:$0xff]
      %v357 = vld [vmem:[%s314 + $0x50] sm:$0xff]
      %v358 = vld [vmem:[%s314 + $0x58] sm:$0x3]
      %v359 = vld [vmem:[%s314 + $0x60] sm:$0xff]
      %v360 = vld [vmem:[%s314 + $0x68] sm:$0xff]
      %v361 = vld [vmem:[%s314 + $0x70] sm:$0x3]
      %v362 = vld [vmem:[%s314 + $0x78] sm:$0xff]
      %v363 = vld [vmem:[%s314 + $0x80] sm:$0xff]
      %v364 = vld [vmem:[%s314 + $0x88] sm:$0x3]
      %v365 = vld [vmem:[%s314 + $0x90] sm:$0xff]
      %v366 = vld [vmem:[%s314 + $0x98] sm:$0xff]
      %v367 = vld [vmem:[%s314 + $0xa0] sm:$0x3]
      %v368 = vld [vmem:[%s314 + $0xa8] sm:$0xff]
      %v369 = vld [vmem:[%s314 + $0xb0] sm:$0xff]
      %v370 = vld [vmem:[%s314 + $0xb8] sm:$0x3]
      %vm371 = vcmask 31744
      %372 = vst.msk [vmem:[#allocation2] sm:$0xff] %vm371, %v347
      %373 = vst.msk [vmem:[#allocation2 + $0x8] sm:$0xff] %vm371, %v348
      %vm374 = vcmask 25600
      %375 = vst.msk [vmem:[#allocation2 + $0x10] sm:$0x3] %vm374, %v349
      %376 = vst.msk [vmem:[#allocation2 + $0x18] sm:$0xff] %vm371, %v350
      %377 = vst.msk [vmem:[#allocation2 + $0x20] sm:$0xff] %vm371, %v351
      %378 = vst.msk [vmem:[#allocation2 + $0x28] sm:$0x3] %vm374, %v352
      %379 = vst.msk [vmem:[#allocation2 + $0x30] sm:$0xff] %vm371, %v353
      %380 = vst.msk [vmem:[#allocation2 + $0x38] sm:$0xff] %vm371, %v354
      %381 = vst.msk [vmem:[#allocation2 + $0x40] sm:$0x3] %vm374, %v355
      %382 = vst.msk [vmem:[#allocation2 + $0x48] sm:$0xff] %vm371, %v356
      %383 = vst.msk [vmem:[#allocation2 + $0x50] sm:$0xff] %vm371, %v357
      %384 = vst.msk [vmem:[#allocation2 + $0x58] sm:$0x3] %vm374, %v358
      %385 = vst.msk [vmem:[#allocation2 + $0x60] sm:$0xff] %vm371, %v359
      %386 = vst.msk [vmem:[#allocation2 + $0x68] sm:$0xff] %vm371, %v360
      %387 = vst.msk [vmem:[#allocation2 + $0x70] sm:$0x3] %vm374, %v361
      %388 = vst.msk [vmem:[#allocation2 + $0x78] sm:$0xff] %vm371, %v362
      %389 = vst.msk [vmem:[#allocation2 + $0x80] sm:$0xff] %vm371, %v363
      %390 = vst.msk [vmem:[#allocation2 + $0x88] sm:$0x3] %vm374, %v364
      %391 = vst.msk [vmem:[#allocation2 + $0x90] sm:$0xff] %vm371, %v365
      %392 = vst.msk [vmem:[#allocation2 + $0x98] sm:$0xff] %vm371, %v366
      %393 = vst.msk [vmem:[#allocation2 + $0xa0] sm:$0x3] %vm374, %v367
      %394 = vst.msk [vmem:[#allocation2 + $0xa8] sm:$0xff] %vm371, %v368
      %395 = vst.msk [vmem:[#allocation2 + $0xb0] sm:$0xff] %vm371, %v369
      %396 = vst.msk [vmem:[#allocation2 + $0xb8] sm:$0x3] %vm374, %v370
      %v397 = vld [vmem:[%s332] sm:$0xff]
      %v398 = vld [vmem:[%s332 + $0x8] sm:$0xff]
      %v399 = vld [vmem:[%s332 + $0x10] sm:$0x3]
      %v400 = vld [vmem:[%s332 + $0x18] sm:$0xff]
      %v401 = vld [vmem:[%s332 + $0x20] sm:$0xff]
      %v402 = vld [vmem:[%s332 + $0x28] sm:$0x3]
      %s403 = scalar_lea.vmem [#allocation2], 192
      %404 = vst.msk [vmem:[%s403] sm:$0xff] %vm371, %v397
      %405 = vst.msk [vmem:[%s403 + $0x8] sm:$0xff] %vm371, %v398
      %406 = vst.msk [vmem:[%s403 + $0x10] sm:$0x3] %vm374, %v399
      %407 = vst.msk [vmem:[%s403 + $0x18] sm:$0xff] %vm371, %v400
      %408 = vst.msk [vmem:[%s403 + $0x20] sm:$0xff] %vm371, %v401
      %409 = vst.msk [vmem:[%s403 + $0x28] sm:$0x3] %vm374, %v402
      %v410 = vld [vmem:[%s2] sm:$0xff]
      %v411 = vld [vmem:[%s2 + $0x8] sm:$0x1]
      %v412 = vld [vmem:[#allocation2] sm:$0xff]
      %v413 = vld [vmem:[#allocation2 + $0x8] sm:$0xff]
      %v414 = vld [vmem:[#allocation2 + $0x18] sm:$0xff]
      %v415 = vld [vmem:[#allocation2 + $0x20] sm:$0xff]
      %v416 = vld [vmem:[#allocation2 + $0x30] sm:$0xff]
      %v417 = vld [vmem:[#allocation2 + $0x38] sm:$0xff]
      %v418 = vld [vmem:[#allocation2 + $0x48] sm:$0xff]
      %v419 = vld [vmem:[#allocation2 + $0x50] sm:$0xff]
      %v420 = vld [vmem:[#allocation2 + $0x60] sm:$0xff]
      %v421 = vld [vmem:[#allocation2 + $0x68] sm:$0xff]
      %v422 = vld [vmem:[#allocation2 + $0x78] sm:$0xff]
      %v423 = vld [vmem:[#allocation2 + $0x80] sm:$0xff]
      %v424 = vld [vmem:[#allocation2 + $0x90] sm:$0xff]
      %v425 = vld [vmem:[#allocation2 + $0x98] sm:$0xff]
      %v426 = vld [vmem:[#allocation2 + $0xa8] sm:$0xff]
      %v427 = vld [vmem:[#allocation2 + $0xb0] sm:$0xff]
      %v428 = vlaneseq
      %v429 = vshrl.u32 %v428, 7
      %v430 = vsub.s32 0, %v429
      %v431 = vrot.slane %v410, %v430
      %v432 = vmul.f32 %v412, %v431
      %v433 = vmul.f32 %v413, %v431
      %v434 = vmul.f32 %v414, %v431
      %v435 = vmul.f32 %v415, %v431
      %v436 = vmul.f32 %v416, %v431
      %v437 = vmul.f32 %v417, %v431
      %v438 = vmul.f32 %v418, %v431
      %v439 = vmul.f32 %v419, %v431
      %v440 = vmul.f32 %v420, %v431
      %v441 = vmul.f32 %v421, %v431
      %v442 = vmul.f32 %v422, %v431
      %v443 = vmul.f32 %v423, %v431
      %v444 = vmul.f32 %v424, %v431
      %v445 = vmul.f32 %v425, %v431
      %v446 = vmul.f32 %v426, %v431
      %v447 = vmul.f32 %v427, %v431
      %v448 = vadd.f32 %v432, 0.0
      %v449 = vadd.f32 %v433, 0.0
      %v450 = vadd.f32 %v434, 0.0
      %v451 = vadd.f32 %v435, 0.0
      %v452 = vadd.f32 %v436, 0.0
      %v453 = vadd.f32 %v437, 0.0
      %v454 = vadd.f32 %v438, 0.0
      %v455 = vadd.f32 %v439, 0.0
      %v456 = vadd.f32 %v440, 0.0
      %v457 = vadd.f32 %v441, 0.0
      %v458 = vadd.f32 %v442, 0.0
      %v459 = vadd.f32 %v443, 0.0
      %v460 = vadd.f32 %v444, 0.0
      %v461 = vadd.f32 %v445, 0.0
      %v462 = vadd.f32 %v446, 0.0
      %v463 = vadd.f32 %v447, 0.0
      %v464 = vld [vmem:[#allocation2 + $0x1] sm:$0xff]
      %v465 = vld [vmem:[#allocation2 + $0x9] sm:$0xff]
      %v466 = vld [vmem:[#allocation2 + $0x19] sm:$0xff]
      %v467 = vld [vmem:[#allocation2 + $0x21] sm:$0xff]
      %v468 = vld [vmem:[#allocation2 + $0x31] sm:$0xff]
      %v469 = vld [vmem:[#allocation2 + $0x39] sm:$0xff]
      %v470 = vld [vmem:[#allocation2 + $0x49] sm:$0xff]
      %v471 = vld [vmem:[#allocation2 + $0x51] sm:$0xff]
      %v472 = vld [vmem:[#allocation2 + $0x61] sm:$0xff]
      %v473 = vld [vmem:[#allocation2 + $0x69] sm:$0xff]
      %v474 = vld [vmem:[#allocation2 + $0x79] sm:$0xff]
      %v475 = vld [vmem:[#allocation2 + $0x81] sm:$0xff]
      %v476 = vld [vmem:[#allocation2 + $0x91] sm:$0xff]
      %v477 = vld [vmem:[#allocation2 + $0x99] sm:$0xff]
      %v478 = vld [vmem:[#allocation2 + $0xa9] sm:$0xff]
      %v479 = vld [vmem:[#allocation2 + $0xb1] sm:$0xff]
      %v480 = vlaneseq
      %v481 = vshrl.u32 %v480, 7
      %v482 = vsub.s32 1, %v481
      %v483 = vrot.slane %v410, %v482
      %v484 = vmul.f32 %v464, %v483
      %v485 = vmul.f32 %v465, %v483
      %v486 = vmul.f32 %v466, %v483
      %v487 = vmul.f32 %v467, %v483
      %v488 = vmul.f32 %v468, %v483
      %v489 = vmul.f32 %v469, %v483
      %v490 = vmul.f32 %v470, %v483
      %v491 = vmul.f32 %v471, %v483
      %v492 = vmul.f32 %v472, %v483
      %v493 = vmul.f32 %v473, %v483
      %v494 = vmul.f32 %v474, %v483
      %v495 = vmul.f32 %v475, %v483
      %v496 = vmul.f32 %v476, %v483
      %v497 = vmul.f32 %v477, %v483
      %v498 = vmul.f32 %v478, %v483
      %v499 = vmul.f32 %v479, %v483
      %v500 = vadd.f32 %v448, %v484
      %v501 = vadd.f32 %v449, %v485
      %v502 = vadd.f32 %v450, %v486
      %v503 = vadd.f32 %v451, %v487
      %v504 = vadd.f32 %v452, %v488
      %v505 = vadd.f32 %v453, %v489
      %v506 = vadd.f32 %v454, %v490
      %v507 = vadd.f32 %v455, %v491
      %v508 = vadd.f32 %v456, %v492
      %v509 = vadd.f32 %v457, %v493
      %v510 = vadd.f32 %v458, %v494
      %v511 = vadd.f32 %v459, %v495
      %v512 = vadd.f32 %v460, %v496
      %v513 = vadd.f32 %v461, %v497
      %v514 = vadd.f32 %v462, %v498
      %v515 = vadd.f32 %v463, %v499
      %v516 = vld [vmem:[#allocation2 + $0x2] sm:$0xff]
      %v517 = vld [vmem:[#allocation2 + $0xa] sm:$0xff]
      %v518 = vld [vmem:[#allocation2 + $0x1a] sm:$0xff]
      %v519 = vld [vmem:[#allocation2 + $0x22] sm:$0xff]
      %v520 = vld [vmem:[#allocation2 + $0x32] sm:$0xff]
      %v521 = vld [vmem:[#allocation2 + $0x3a] sm:$0xff]
      %v522 = vld [vmem:[#allocation2 + $0x4a] sm:$0xff]
      %v523 = vld [vmem:[#allocation2 + $0x52] sm:$0xff]
      %v524 = vld [vmem:[#allocation2 + $0x62] sm:$0xff]
      %v525 = vld [vmem:[#allocation2 + $0x6a] sm:$0xff]
      %v526 = vld [vmem:[#allocation2 + $0x7a] sm:$0xff]
      %v527 = vld [vmem:[#allocation2 + $0x82] sm:$0xff]
      %v528 = vld [vmem:[#allocation2 + $0x92] sm:$0xff]
      %v529 = vld [vmem:[#allocation2 + $0x9a] sm:$0xff]
      %v530 = vld [vmem:[#allocation2 + $0xaa] sm:$0xff]
      %v531 = vld [vmem:[#allocation2 + $0xb2] sm:$0xff]
      %v532 = vlaneseq
      %v533 = vshrl.u32 %v532, 7
      %v534 = vsub.s32 2, %v533
      %v535 = vrot.slane %v410, %v534
      %v536 = vmul.f32 %v516, %v535
      %v537 = vmul.f32 %v517, %v535
      %v538 = vmul.f32 %v518, %v535
      %v539 = vmul.f32 %v519, %v535
      %v540 = vmul.f32 %v520, %v535
      %v541 = vmul.f32 %v521, %v535
      %v542 = vmul.f32 %v522, %v535
      %v543 = vmul.f32 %v523, %v535
      %v544 = vmul.f32 %v524, %v535
      %v545 = vmul.f32 %v525, %v535
      %v546 = vmul.f32 %v526, %v535
      %v547 = vmul.f32 %v527, %v535
      %v548 = vmul.f32 %v528, %v535
      %v549 = vmul.f32 %v529, %v535
      %v550 = vmul.f32 %v530, %v535
      %v551 = vmul.f32 %v531, %v535
      %v552 = vadd.f32 %v500, %v536
      %v553 = vadd.f32 %v501, %v537
      %v554 = vadd.f32 %v502, %v538
      %v555 = vadd.f32 %v503, %v539
      %v556 = vadd.f32 %v504, %v540
      %v557 = vadd.f32 %v505, %v541
      %v558 = vadd.f32 %v506, %v542
      %v559 = vadd.f32 %v507, %v543
      %v560 = vadd.f32 %v508, %v544
      %v561 = vadd.f32 %v509, %v545
      %v562 = vadd.f32 %v510, %v546
      %v563 = vadd.f32 %v511, %v547
      %v564 = vadd.f32 %v512, %v548
      %v565 = vadd.f32 %v513, %v549
      %v566 = vadd.f32 %v514, %v550
      %v567 = vadd.f32 %v515, %v551
      %s568 = scalar_lea.vmem [#allocation2], 24
      %v569 = vld [vmem:[%s568] sm:$0xff]
      %v570 = vld [vmem:[%s568 + $0x8] sm:$0xff]
      %v571 = vld [vmem:[%s568 + $0x18] sm:$0xff]
      %v572 = vld [vmem:[%s568 + $0x20] sm:$0xff]
      %v573 = vld [vmem:[%s568 + $0x30] sm:$0xff]
      %v574 = vld [vmem:[%s568 + $0x38] sm:$0xff]
      %v575 = vld [vmem:[%s568 + $0x48] sm:$0xff]
      %v576 = vld [vmem:[%s568 + $0x50] sm:$0xff]
      %v577 = vld [vmem:[%s568 + $0x60] sm:$0xff]
      %v578 = vld [vmem:[%s568 + $0x68] sm:$0xff]
      %v579 = vld [vmem:[%s568 + $0x78] sm:$0xff]
      %v580 = vld [vmem:[%s568 + $0x80] sm:$0xff]
      %v581 = vld [vmem:[%s568 + $0x90] sm:$0xff]
      %v582 = vld [vmem:[%s568 + $0x98] sm:$0xff]
      %v583 = vld [vmem:[%s568 + $0xa8] sm:$0xff]
      %v584 = vld [vmem:[%s568 + $0xb0] sm:$0xff]
      %v585 = vlaneseq
      %v586 = vshrl.u32 %v585, 7
      %v587 = vsub.s32 3, %v586
      %v588 = vrot.slane %v410, %v587
      %v589 = vmul.f32 %v569, %v588
      %v590 = vmul.f32 %v570, %v588
      %v591 = vmul.f32 %v571, %v588
      %v592 = vmul.f32 %v572, %v588
      %v593 = vmul.f32 %v573, %v588
      %v594 = vmul.f32 %v574, %v588
      %v595 = vmul.f32 %v575, %v588
      %v596 = vmul.f32 %v576, %v588
      %v597 = vmul.f32 %v577, %v588
      %v598 = vmul.f32 %v578, %v588
      %v599 = vmul.f32 %v579, %v588
      %v600 = vmul.f32 %v580, %v588
      %v601 = vmul.f32 %v581, %v588
      %v602 = vmul.f32 %v582, %v588
      %v603 = vmul.f32 %v583, %v588
      %v604 = vmul.f32 %v584, %v588
      %v605 = vadd.f32 %v552, %v589
      %v606 = vadd.f32 %v553, %v590
      %v607 = vadd.f32 %v554, %v591
      %v608 = vadd.f32 %v555, %v592
      %v609 = vadd.f32 %v556, %v593
      %v610 = vadd.f32 %v557, %v594
      %v611 = vadd.f32 %v558, %v595
      %v612 = vadd.f32 %v559, %v596
      %v613 = vadd.f32 %v560, %v597
      %v614 = vadd.f32 %v561, %v598
      %v615 = vadd.f32 %v562, %v599
      %v616 = vadd.f32 %v563, %v600
      %v617 = vadd.f32 %v564, %v601
      %v618 = vadd.f32 %v565, %v602
      %v619 = vadd.f32 %v566, %v603
      %v620 = vadd.f32 %v567, %v604
      %v621 = vld [vmem:[%s568 + $0x1] sm:$0xff]
      %v622 = vld [vmem:[%s568 + $0x9] sm:$0xff]
      %v623 = vld [vmem:[%s568 + $0x19] sm:$0xff]
      %v624 = vld [vmem:[%s568 + $0x21] sm:$0xff]
      %v625 = vld [vmem:[%s568 + $0x31] sm:$0xff]
      %v626 = vld [vmem:[%s568 + $0x39] sm:$0xff]
      %v627 = vld [vmem:[%s568 + $0x49] sm:$0xff]
      %v628 = vld [vmem:[%s568 + $0x51] sm:$0xff]
      %v629 = vld [vmem:[%s568 + $0x61] sm:$0xff]
      %v630 = vld [vmem:[%s568 + $0x69] sm:$0xff]
      %v631 = vld [vmem:[%s568 + $0x79] sm:$0xff]
      %v632 = vld [vmem:[%s568 + $0x81] sm:$0xff]
      %v633 = vld [vmem:[%s568 + $0x91] sm:$0xff]
      %v634 = vld [vmem:[%s568 + $0x99] sm:$0xff]
      %v635 = vld [vmem:[%s568 + $0xa9] sm:$0xff]
      %v636 = vld [vmem:[%s568 + $0xb1] sm:$0xff]
      %v637 = vlaneseq
      %v638 = vshrl.u32 %v637, 7
      %v639 = vsub.s32 4, %v638
      %v640 = vrot.slane %v410, %v639
      %v641 = vmul.f32 %v621, %v640
      %v642 = vmul.f32 %v622, %v640
      %v643 = vmul.f32 %v623, %v640
      %v644 = vmul.f32 %v624, %v640
      %v645 = vmul.f32 %v625, %v640
      %v646 = vmul.f32 %v626, %v640
      %v647 = vmul.f32 %v627, %v640
      %v648 = vmul.f32 %v628, %v640
      %v649 = vmul.f32 %v629, %v640
      %v650 = vmul.f32 %v630, %v640
      %v651 = vmul.f32 %v631, %v640
      %v652 = vmul.f32 %v632, %v640
      %v653 = vmul.f32 %v633, %v640
      %v654 = vmul.f32 %v634, %v640
      %v655 = vmul.f32 %v635, %v640
      %v656 = vmul.f32 %v636, %v640
      %v657 = vadd.f32 %v605, %v641
      %v658 = vadd.f32 %v606, %v642
      %v659 = vadd.f32 %v607, %v643
      %v660 = vadd.f32 %v608, %v644
      %v661 = vadd.f32 %v609, %v645
      %v662 = vadd.f32 %v610, %v646
      %v663 = vadd.f32 %v611, %v647
      %v664 = vadd.f32 %v612, %v648
      %v665 = vadd.f32 %v613, %v649
      %v666 = vadd.f32 %v614, %v650
      %v667 = vadd.f32 %v615, %v651
      %v668 = vadd.f32 %v616, %v652
      %v669 = vadd.f32 %v617, %v653
      %v670 = vadd.f32 %v618, %v654
      %v671 = vadd.f32 %v619, %v655
      %v672 = vadd.f32 %v620, %v656
      %v673 = vld [vmem:[%s568 + $0x2] sm:$0xff]
      %v674 = vld [vmem:[%s568 + $0xa] sm:$0xff]
      %v675 = vld [vmem:[%s568 + $0x1a] sm:$0xff]
      %v676 = vld [vmem:[%s568 + $0x22] sm:$0xff]
      %v677 = vld [vmem:[%s568 + $0x32] sm:$0xff]
      %v678 = vld [vmem:[%s568 + $0x3a] sm:$0xff]
      %v679 = vld [vmem:[%s568 + $0x4a] sm:$0xff]
      %v680 = vld [vmem:[%s568 + $0x52] sm:$0xff]
      %v681 = vld [vmem:[%s568 + $0x62] sm:$0xff]
      %v682 = vld [vmem:[%s568 + $0x6a] sm:$0xff]
      %v683 = vld [vmem:[%s568 + $0x7a] sm:$0xff]
      %v684 = vld [vmem:[%s568 + $0x82] sm:$0xff]
      %v685 = vld [vmem:[%s568 + $0x92] sm:$0xff]
      %v686 = vld [vmem:[%s568 + $0x9a] sm:$0xff]
      %v687 = vld [vmem:[%s568 + $0xaa] sm:$0xff]
      %v688 = vld [vmem:[%s568 + $0xb2] sm:$0xff]
      %v689 = vlaneseq
      %v690 = vshrl.u32 %v689, 7
      %v691 = vsub.s32 5, %v690
      %v692 = vrot.slane %v410, %v691
      %v693 = vmul.f32 %v673, %v692
      %v694 = vmul.f32 %v674, %v692
      %v695 = vmul.f32 %v675, %v692
      %v696 = vmul.f32 %v676, %v692
      %v697 = vmul.f32 %v677, %v692
      %v698 = vmul.f32 %v678, %v692
      %v699 = vmul.f32 %v679, %v692
      %v700 = vmul.f32 %v680, %v692
      %v701 = vmul.f32 %v681, %v692
      %v702 = vmul.f32 %v682, %v692
      %v703 = vmul.f32 %v683, %v692
      %v704 = vmul.f32 %v684, %v692
      %v705 = vmul.f32 %v685, %v692
      %v706 = vmul.f32 %v686, %v692
      %v707 = vmul.f32 %v687, %v692
      %v708 = vmul.f32 %v688, %v692
      %v709 = vadd.f32 %v657, %v693
      %v710 = vadd.f32 %v658, %v694
      %v711 = vadd.f32 %v659, %v695
      %v712 = vadd.f32 %v660, %v696
      %v713 = vadd.f32 %v661, %v697
      %v714 = vadd.f32 %v662, %v698
      %v715 = vadd.f32 %v663, %v699
      %v716 = vadd.f32 %v664, %v700
      %v717 = vadd.f32 %v665, %v701
      %v718 = vadd.f32 %v666, %v702
      %v719 = vadd.f32 %v667, %v703
      %v720 = vadd.f32 %v668, %v704
      %v721 = vadd.f32 %v669, %v705
      %v722 = vadd.f32 %v670, %v706
      %v723 = vadd.f32 %v671, %v707
      %v724 = vadd.f32 %v672, %v708
      %s725 = scalar_lea.vmem [#allocation2], 48
      %v726 = vld [vmem:[%s725] sm:$0xff]
      %v727 = vld [vmem:[%s725 + $0x8] sm:$0xff]
      %v728 = vld [vmem:[%s725 + $0x18] sm:$0xff]
      %v729 = vld [vmem:[%s725 + $0x20] sm:$0xff]
      %v730 = vld [vmem:[%s725 + $0x30] sm:$0xff]
      %v731 = vld [vmem:[%s725 + $0x38] sm:$0xff]
      %v732 = vld [vmem:[%s725 + $0x48] sm:$0xff]
      %v733 = vld [vmem:[%s725 + $0x50] sm:$0xff]
      %v734 = vld [vmem:[%s725 + $0x60] sm:$0xff]
      %v735 = vld [vmem:[%s725 + $0x68] sm:$0xff]
      %v736 = vld [vmem:[%s725 + $0x78] sm:$0xff]
      %v737 = vld [vmem:[%s725 + $0x80] sm:$0xff]
      %v738 = vld [vmem:[%s725 + $0x90] sm:$0xff]
      %v739 = vld [vmem:[%s725 + $0x98] sm:$0xff]
      %v740 = vld [vmem:[%s725 + $0xa8] sm:$0xff]
      %v741 = vld [vmem:[%s725 + $0xb0] sm:$0xff]
      %v742 = vlaneseq
      %v743 = vshrl.u32 %v742, 7
      %v744 = vsub.s32 6, %v743
      %v745 = vrot.slane %v410, %v744
      %v746 = vmul.f32 %v726, %v745
      %v747 = vmul.f32 %v727, %v745
      %v748 = vmul.f32 %v728, %v745
      %v749 = vmul.f32 %v729, %v745
      %v750 = vmul.f32 %v730, %v745
      %v751 = vmul.f32 %v731, %v745
      %v752 = vmul.f32 %v732, %v745
      %v753 = vmul.f32 %v733, %v745
      %v754 = vmul.f32 %v734, %v745
      %v755 = vmul.f32 %v735, %v745
      %v756 = vmul.f32 %v736, %v745
      %v757 = vmul.f32 %v737, %v745
      %v758 = vmul.f32 %v738, %v745
      %v759 = vmul.f32 %v739, %v745
      %v760 = vmul.f32 %v740, %v745
      %v761 = vmul.f32 %v741, %v745
      %v762 = vadd.f32 %v709, %v746
      %v763 = vadd.f32 %v710, %v747
      %v764 = vadd.f32 %v711, %v748
      %v765 = vadd.f32 %v712, %v749
      %v766 = vadd.f32 %v713, %v750
      %v767 = vadd.f32 %v714, %v751
      %v768 = vadd.f32 %v715, %v752
      %v769 = vadd.f32 %v716, %v753
      %v770 = vadd.f32 %v717, %v754
      %v771 = vadd.f32 %v718, %v755
      %v772 = vadd.f32 %v719, %v756
      %v773 = vadd.f32 %v720, %v757
      %v774 = vadd.f32 %v721, %v758
      %v775 = vadd.f32 %v722, %v759
      %v776 = vadd.f32 %v723, %v760
      %v777 = vadd.f32 %v724, %v761
      %v778 = vld [vmem:[%s725 + $0x1] sm:$0xff]
      %v779 = vld [vmem:[%s725 + $0x9] sm:$0xff]
      %v780 = vld [vmem:[%s725 + $0x19] sm:$0xff]
      %v781 = vld [vmem:[%s725 + $0x21] sm:$0xff]
      %v782 = vld [vmem:[%s725 + $0x31] sm:$0xff]
      %v783 = vld [vmem:[%s725 + $0x39] sm:$0xff]
      %v784 = vld [vmem:[%s725 + $0x49] sm:$0xff]
      %v785 = vld [vmem:[%s725 + $0x51] sm:$0xff]
      %v786 = vld [vmem:[%s725 + $0x61] sm:$0xff]
      %v787 = vld [vmem:[%s725 + $0x69] sm:$0xff]
      %v788 = vld [vmem:[%s725 + $0x79] sm:$0xff]
      %v789 = vld [vmem:[%s725 + $0x81] sm:$0xff]
      %v790 = vld [vmem:[%s725 + $0x91] sm:$0xff]
      %v791 = vld [vmem:[%s725 + $0x99] sm:$0xff]
      %v792 = vld [vmem:[%s725 + $0xa9] sm:$0xff]
      %v793 = vld [vmem:[%s725 + $0xb1] sm:$0xff]
      %v794 = vlaneseq
      %v795 = vshrl.u32 %v794, 7
      %v796 = vsub.s32 7, %v795
      %v797 = vrot.slane %v410, %v796
      %v798 = vmul.f32 %v778, %v797
      %v799 = vmul.f32 %v779, %v797
      %v800 = vmul.f32 %v780, %v797
      %v801 = vmul.f32 %v781, %v797
      %v802 = vmul.f32 %v782, %v797
      %v803 = vmul.f32 %v783, %v797
      %v804 = vmul.f32 %v784, %v797
      %v805 = vmul.f32 %v785, %v797
      %v806 = vmul.f32 %v786, %v797
      %v807 = vmul.f32 %v787, %v797
      %v808 = vmul.f32 %v788, %v797
      %v809 = vmul.f32 %v789, %v797
      %v810 = vmul.f32 %v790, %v797
      %v811 = vmul.f32 %v791, %v797
      %v812 = vmul.f32 %v792, %v797
      %v813 = vmul.f32 %v793, %v797
      %v814 = vadd.f32 %v762, %v798
      %v815 = vadd.f32 %v763, %v799
      %v816 = vadd.f32 %v764, %v800
      %v817 = vadd.f32 %v765, %v801
      %v818 = vadd.f32 %v766, %v802
      %v819 = vadd.f32 %v767, %v803
      %v820 = vadd.f32 %v768, %v804
      %v821 = vadd.f32 %v769, %v805
      %v822 = vadd.f32 %v770, %v806
      %v823 = vadd.f32 %v771, %v807
      %v824 = vadd.f32 %v772, %v808
      %v825 = vadd.f32 %v773, %v809
      %v826 = vadd.f32 %v774, %v810
      %v827 = vadd.f32 %v775, %v811
      %v828 = vadd.f32 %v776, %v812
      %v829 = vadd.f32 %v777, %v813
      %v830 = vld [vmem:[%s725 + $0x2] sm:$0xff]
      %v831 = vld [vmem:[%s725 + $0xa] sm:$0xff]
      %v832 = vld [vmem:[%s725 + $0x1a] sm:$0xff]
      %v833 = vld [vmem:[%s725 + $0x22] sm:$0xff]
      %v834 = vld [vmem:[%s725 + $0x32] sm:$0xff]
      %v835 = vld [vmem:[%s725 + $0x3a] sm:$0xff]
      %v836 = vld [vmem:[%s725 + $0x4a] sm:$0xff]
      %v837 = vld [vmem:[%s725 + $0x52] sm:$0xff]
      %v838 = vld [vmem:[%s725 + $0x62] sm:$0xff]
      %v839 = vld [vmem:[%s725 + $0x6a] sm:$0xff]
      %v840 = vld [vmem:[%s725 + $0x7a] sm:$0xff]
      %v841 = vld [vmem:[%s725 + $0x82] sm:$0xff]
      %v842 = vld [vmem:[%s725 + $0x92] sm:$0xff]
      %v843 = vld [vmem:[%s725 + $0x9a] sm:$0xff]
      %v844 = vld [vmem:[%s725 + $0xaa] sm:$0xff]
      %v845 = vld [vmem:[%s725 + $0xb2] sm:$0xff]
      %v846 = vlaneseq
      %v847 = vshrl.u32 %v846, 7
      %v848 = vsub.s32 0, %v847
      %v849 = vrot.slane %v411, %v848
      %v850 = vmul.f32 %v830, %v849
      %v851 = vmul.f32 %v831, %v849
      %v852 = vmul.f32 %v832, %v849
      %v853 = vmul.f32 %v833, %v849
      %v854 = vmul.f32 %v834, %v849
      %v855 = vmul.f32 %v835, %v849
      %v856 = vmul.f32 %v836, %v849
      %v857 = vmul.f32 %v837, %v849
      %v858 = vmul.f32 %v838, %v849
      %v859 = vmul.f32 %v839, %v849
      %v860 = vmul.f32 %v840, %v849
      %v861 = vmul.f32 %v841, %v849
      %v862 = vmul.f32 %v842, %v849
      %v863 = vmul.f32 %v843, %v849
      %v864 = vmul.f32 %v844, %v849
      %v865 = vmul.f32 %v845, %v849
      %v866 = vadd.f32 %v814, %v850
      %v867 = vadd.f32 %v815, %v851
      %v868 = vadd.f32 %v816, %v852
      %v869 = vadd.f32 %v817, %v853
      %v870 = vadd.f32 %v818, %v854
      %v871 = vadd.f32 %v819, %v855
      %v872 = vadd.f32 %v820, %v856
      %v873 = vadd.f32 %v821, %v857
      %v874 = vadd.f32 %v822, %v858
      %v875 = vadd.f32 %v823, %v859
      %v876 = vadd.f32 %v824, %v860
      %v877 = vadd.f32 %v825, %v861
      %v878 = vadd.f32 %v826, %v862
      %v879 = vadd.f32 %v827, %v863
      %v880 = vadd.f32 %v828, %v864
      %v881 = vadd.f32 %v829, %v865
      %v882 = vld [vmem:[%s3] sm:$0xf]
      %v883 = vld [vmem:[%s4] sm:$0x1]
      %v885 = vlaneseq
      %v886 = vshrl.u32 %v885, 7
      %v887 = vsub.s32 0, %v886
      %v888 = vrot.slane %v883, %v887
      %v891 = vsel %vm371, %v866, 0
      %v894 = vsel %vm371, %v867, 0
      %v897 = vsel %vm371, %v868, 0
      %v900 = vsel %vm371, %v869, 0
      %v903 = vsel %vm371, %v870, 0
      %v906 = vsel %vm371, %v871, 0
      %v909 = vsel %vm371, %v872, 0
      %v912 = vsel %vm371, %v873, 0
      %v915 = vsel %vm371, %v874, 0
      %v918 = vsel %vm371, %v875, 0
      %v921 = vsel %vm371, %v876, 0
      %v924 = vsel %vm371, %v877, 0
      %v927 = vsel %vm371, %v878, 0
      %v930 = vsel %vm371, %v879, 0
      %v933 = vsel %vm371, %v880, 0
      %v936 = vsel %vm371, %v881, 0
      %vm938 = vcmask 1043456
      %v940 = vsel %vm938, %v882, 0
      %942 = vmatprep.subr.mxu0 0.0
      %943 = vmatpush1.msra.mxu0 %v940
      %944 = vmatprep.subr.mxu0 0.0
      %945 = vmatpush1.msra.mxu0 0.0
      %946 = vmatprep.subr.mxu0 0.0
      %947 = vmatpush1.msra.mxu0 0.0
      %948 = vmatprep.subr.mxu0 0.0
      %949 = vmatpush1.msra.mxu0 0.0
      %950 = vmatprep.subr.mxu0 0.0
      %951 = vmatpush1.msra.mxu0 0.0
      %952 = vmatprep.subr.mxu0 0.0
      %953 = vmatpush1.msra.mxu0 0.0
      %954 = vmatprep.subr.mxu0 0.0
      %955 = vmatpush1.msra.mxu0 0.0
      %956 = vmatprep.subr.mxu0 0.0
      %957 = vmatpush1.msra.mxu0 0.0
      %958 = vmatprep.subr.mxu0 0.0
      %959 = vmatpush1.msra.mxu0 0.0
      %960 = vmatprep.subr.mxu0 0.0
      %961 = vmatpush1.msra.mxu0 0.0
      %962 = vmatprep.subr.mxu0 0.0
      %963 = vmatpush1.msra.mxu0 0.0
      %964 = vmatprep.subr.mxu0 0.0
      %965 = vmatpush1.msra.mxu0 0.0
      %966 = vmatprep.subr.mxu0 0.0
      %967 = vmatpush1.msra.mxu0 0.0
      %968 = vmatprep.subr.mxu0 0.0
      %969 = vmatpush1.msra.mxu0 0.0
      %970 = vmatprep.subr.mxu0 0.0
      %971 = vmatpush1.msra.mxu0 0.0
      %972 = vmatprep.subr.mxu0 0.0
      %973 = vmatpush1.msra.mxu0 0.0
      %974 = vmatprep.subr.mxu0 0.0
      %975 = vmatpush1.msra.mxu0 0.0
      %976 = vmatprep.subr.mxu0 0.0
      %977 = vmatpush1.msra.mxu0 0.0
      %978 = vmatprep.subr.mxu0 0.0
      %979 = vmatpush1.msra.mxu0 0.0
      %980 = vmatprep.subr.mxu0 0.0
      %981 = vmatpush1.msra.mxu0 0.0
      %982 = vmatprep.subr.mxu0 0.0
      %983 = vmatpush1.msra.mxu0 0.0
      %984 = vmatprep.subr.mxu0 0.0
      %985 = vmatpush1.msra.mxu0 0.0
      %986 = vmatprep.subr.mxu0 0.0
      %987 = vmatpush1.msra.mxu0 0.0
      %988 = vmatprep.subr.mxu0 0.0
      %989 = vmatpush1.msra.mxu0 0.0
      %990 = vmatprep.subr.mxu0 0.0
      %991 = vmatpush1.msra.mxu0 0.0
      %992 = vmatprep.subr.mxu0 0.0
      %993 = vmatpush1.msra.mxu0 0.0
      %994 = vmatprep.subr.mxu0 0.0
      %995 = vmatpush1.msra.mxu0 0.0
      %996 = vmatprep.subr.mxu0 0.0
      %997 = vmatpush1.msra.mxu0 0.0
      %998 = vmatprep.subr.mxu0 0.0
      %999 = vmatpush1.msra.mxu0 0.0
      %1000 = vmatprep.subr.mxu0 0.0
      %1001 = vmatpush1.msra.mxu0 0.0
      %1002 = vmatprep.subr.mxu0 0.0
      %1003 = vmatpush1.msra.mxu0 0.0
      %1004 = vmatprep.subr.mxu0 0.0
      %1005 = vmatpush1.msra.mxu0 0.0
      %1006 = vmatprep.mubr.f32.mxu0 0.0
      %1007 = vmatmul.mubr.f32.gmra.mrb[0].mxu0 %v891
      %v1008 = vpop.f32.mrb[0].mxu0
      %v1009 = vadd.f32 %v888, %v1008
      %v1010 = vpop.f32.mrb[0].mxu0
      %1011 = vmatprep.mubr.f32.mxu0 0.0
      %1012 = vmatmul.mubr.f32.gmra.mrb[0].mxu0 %v894
      %v1013 = vpop.f32.mrb[0].mxu0
      %v1014 = vadd.f32 %v888, %v1013
      %v1015 = vpop.f32.mrb[0].mxu0
      %1016 = vmatprep.mubr.f32.mxu0 0.0
      %1017 = vmatmul.mubr.f32.gmra.mrb[0].mxu0 %v897
      %v1018 = vpop.f32.mrb[0].mxu0
      %v1019 = vadd.f32 %v888, %v1018
      %v1020 = vpop.f32.mrb[0].mxu0
      %1021 = vmatprep.mubr.f32.mxu0 0.0
      %1022 = vmatmul.mubr.f32.gmra.mrb[0].mxu0 %v900
      %v1023 = vpop.f32.mrb[0].mxu0
      %v1024 = vadd.f32 %v888, %v1023
      %v1025 = vpop.f32.mrb[0].mxu0
      %1026 = vmatprep.mubr.f32.mxu0 0.0
      %1027 = vmatmul.mubr.f32.gmra.mrb[0].mxu0 %v903
      %v1028 = vpop.f32.mrb[0].mxu0
      %v1029 = vadd.f32 %v888, %v1028
      %v1030 = vpop.f32.mrb[0].mxu0
      %1031 = vmatprep.mubr.f32.mxu0 0.0
      %1032 = vmatmul.mubr.f32.gmra.mrb[0].mxu0 %v906
      %v1033 = vpop.f32.mrb[0].mxu0
      %v1034 = vadd.f32 %v888, %v1033
      %v1035 = vpop.f32.mrb[0].mxu0
      %1036 = vmatprep.mubr.f32.mxu0 0.0
      %1037 = vmatmul.mubr.f32.gmra.mrb[0].mxu0 %v909
      %v1038 = vpop.f32.mrb[0].mxu0
      %v1039 = vadd.f32 %v888, %v1038
      %v1040 = vpop.f32.mrb[0].mxu0
      %1041 = vmatprep.mubr.f32.mxu0 0.0
      %1042 = vmatmul.mubr.f32.gmra.mrb[0].mxu0 %v912
      %v1043 = vpop.f32.mrb[0].mxu0
      %v1044 = vadd.f32 %v888, %v1043
      %v1045 = vpop.f32.mrb[0].mxu0
      %1046 = vmatprep.mubr.f32.mxu0 0.0
      %1047 = vmatmul.mubr.f32.gmra.mrb[0].mxu0 %v915
      %v1048 = vpop.f32.mrb[0].mxu0
      %v1049 = vadd.f32 %v888, %v1048
      %v1050 = vpop.f32.mrb[0].mxu0
      %1051 = vmatprep.mubr.f32.mxu0 0.0
      %1052 = vmatmul.mubr.f32.gmra.mrb[0].mxu0 %v918
      %v1053 = vpop.f32.mrb[0].mxu0
      %v1054 = vadd.f32 %v888, %v1053
      %v1055 = vpop.f32.mrb[0].mxu0
      %1056 = vmatprep.mubr.f32.mxu0 0.0
      %1057 = vmatmul.mubr.f32.gmra.mrb[0].mxu0 %v921
      %v1058 = vpop.f32.mrb[0].mxu0
      %v1059 = vadd.f32 %v888, %v1058
      %v1060 = vpop.f32.mrb[0].mxu0
      %1061 = vmatprep.mubr.f32.mxu0 0.0
      %1062 = vmatmul.mubr.f32.gmra.mrb[0].mxu0 %v924
      %v1063 = vpop.f32.mrb[0].mxu0
      %v1064 = vadd.f32 %v888, %v1063
      %v1065 = vpop.f32.mrb[0].mxu0
      %1066 = vmatprep.mubr.f32.mxu0 0.0
      %1067 = vmatmul.mubr.f32.gmra.mrb[0].mxu0 %v927
      %v1068 = vpop.f32.mrb[0].mxu0
      %v1069 = vadd.f32 %v888, %v1068
      %v1070 = vpop.f32.mrb[0].mxu0
      %1071 = vmatprep.mubr.f32.mxu0 0.0
      %1072 = vmatmul.mubr.f32.gmra.mrb[0].mxu0 %v930
      %v1073 = vpop.f32.mrb[0].mxu0
      %v1074 = vadd.f32 %v888, %v1073
      %v1075 = vpop.f32.mrb[0].mxu0
      %1076 = vmatprep.mubr.f32.mxu0 0.0
      %1077 = vmatmul.mubr.f32.gmra.mrb[0].mxu0 %v933
      %v1078 = vpop.f32.mrb[0].mxu0
      %v1079 = vadd.f32 %v888, %v1078
      %v1080 = vpop.f32.mrb[0].mxu0
      %1081 = vmatprep.mubr.f32.mxu0 0.0
      %1082 = vmatmul.mubr.f32.gmra.mrb[0].mxu0 %v936
      %v1083 = vpop.f32.mrb[0].mxu0
      %v1084 = vadd.f32 %v888, %v1083
      %v1085 = vpop.f32.mrb[0].mxu0
      %1086 = vdwg.mxu0
      %vm1087 = vcmask 64512
      %1088 = vst.msk [vmem:[%s345] sm:$0xff] %vm1087, %v1009
      %1089 = vst.msk [vmem:[%s345 + $0x8] sm:$0xff] %vm1087, %v1014
      %1090 = vst.msk [vmem:[%s345 + $0x10] sm:$0xff] %vm1087, %v1019
      %1091 = vst.msk [vmem:[%s345 + $0x18] sm:$0xff] %vm1087, %v1024
      %1092 = vst.msk [vmem:[%s345 + $0x20] sm:$0xff] %vm1087, %v1029
      %1093 = vst.msk [vmem:[%s345 + $0x28] sm:$0xff] %vm1087, %v1034
      %1094 = vst.msk [vmem:[%s345 + $0x30] sm:$0xff] %vm1087, %v1039
      %1095 = vst.msk [vmem:[%s345 + $0x38] sm:$0xff] %vm1087, %v1044
      %1096 = vst.msk [vmem:[%s345 + $0x40] sm:$0xff] %vm1087, %v1049
      %1097 = vst.msk [vmem:[%s345 + $0x48] sm:$0xff] %vm1087, %v1054
      %1098 = vst.msk [vmem:[%s345 + $0x50] sm:$0xff] %vm1087, %v1059
      %1099 = vst.msk [vmem:[%s345 + $0x58] sm:$0xff] %vm1087, %v1064
      %1100 = vst.msk [vmem:[%s345 + $0x60] sm:$0xff] %vm1087, %v1069
      %1101 = vst.msk [vmem:[%s345 + $0x68] sm:$0xff] %vm1087, %v1074
      %1102 = vst.msk [vmem:[%s345 + $0x70] sm:$0xff] %vm1087, %v1079
      %1103 = vst.msk [vmem:[%s345 + $0x78] sm:$0xff] %vm1087, %v1084
      %s1104 = smul.u32 8, %s21
      %p1105 = scmp.lt.s32.totalorder %s20, 1
      %s1106 = scalar_select %p1105, %s20, 1
      %p1107 = scmp.lt.s32.totalorder %s1104, 15
      %s1108 = scalar_select %p1107, %s1104, 15
      %s1109 = smul.addr %s1108, 2
      %s1110 = smul.addr %s1106, 32
      %s1111 = sadd.s32 %s1109, %s1110
      %s1112 = smul.addr %s1111, 8
      %s1113 = scalar_lea.vmem %s5, %s1112
      // Predicated region
      $region41: #{tpu_custom_call.1} parent=39 // pred_check
        %p1114 = pneg %p171
      $region42: #{tpu_custom_call.1} parent=39 // pred_check_branch
        %1116 = sbr.rel (%p1114) target = $region44
      $region43: #{tpu_custom_call.1} parent=39 // pred_region
        %s1117 = smul.u32 8, %s21
      $region44: #{tpu_custom_call.1} parent=39 // pred_fallthru
        _
    $region40: #{tpu_custom_call.1} parent=5 // pred_fallthru
      _
    %p1118 = scmp.le.s32.totalorder 2, %s11
    // Predicated region
    $region45: #{tpu_custom_call.1} parent=5 // pred_check
      %p1119 = pneg %p1118
    $region46: #{tpu_custom_call.1} parent=5 // pred_check_branch
      %1121 = sbr.rel (%p1119) target = $region48
    $region47: #{tpu_custom_call.1} parent=5 // pred_region
      %s1122 = ssub.s32 %s11, 2
      // Predicated region
      $region49: #{tpu_custom_call.1} parent=47 // pred_check
        %p1123 = pneg %p177
      $region50: #{tpu_custom_call.1} parent=47 // pred_check_branch
        %1125 = sbr.rel (%p1123) target = $region52
      $region51: #{tpu_custom_call.1} parent=47 // pred_region
        %s1126 = smul.u32 8, %s23
        %p1127 = scmp.lt.s32.totalorder %s22, 1
        %s1128 = scalar_select %p1127, %s22, 1
        %p1129 = scmp.lt.s32.totalorder %s1126, 15
        %s1130 = scalar_select %p1129, %s1126, 15
        %s1131 = smul.addr %s1130, 2
        %s1132 = smul.addr %s1128, 32
        %s1133 = sadd.s32 %s1131, %s1132
        %s1134 = smul.addr %s1133, 8
        %s1135 = scalar_lea.vmem %s5, %s1134
      $region52: #{tpu_custom_call.1} parent=47 // pred_fallthru
        _
    $region48: #{tpu_custom_call.1} parent=5 // pred_fallthru
      _
  $region6: #{tpu_custom_call.1} parent=0 // loop_footer
    %s15 = sadd.s32 1, %s11
  $region7: #{tpu_custom_call.1} parent=0 // loop_footer_branch
    %10 = sbr.rel target = $region3
  $region8: #{tpu_custom_call.1} parent=0 // loop_exit
    _

</llo_original>
